<compile_context>
chip_gen: v7x
topology: tpu7x:2x2x1
jax: 0.10.0
libtpu: 0.0.40
codegen_flags: <defaults>
</compile_context>

<pallas_src>
import functools

import jax
import jax.numpy as jnp
from jax.experimental import pallas as pl
from jax.experimental.pallas import tpu as pltpu


def _initial_block_kernel(patches_ref, w_ref, out_ref, *, cin):
    # patches_ref: (1, 9*cin, TM)   im2col taps, channels-first, spatial on lanes
    # w_ref:       (Cconv, 9*cin)   conv weights, tap-major columns
    # out_ref:     (1, Cconv+cin, TM)
    p = patches_ref[0]                                   # (9*cin, TM)

    # Conv path: one MXU matmul per tile, f32 accumulation.
    conv = jnp.dot(w_ref[...], p, preferred_element_type=jnp.float32)  # (Cconv, TM)

    # 2x2/stride-2 max-pool of the raw input == elementwise max over the
    # interior taps (kh,kw) in {1,2}x{1,2} of the padded im2col (VPU work).
    pooled = jnp.maximum(
        jnp.maximum(p[4 * cin:5 * cin], p[5 * cin:6 * cin]),
        jnp.maximum(p[7 * cin:8 * cin], p[8 * cin:9 * cin]))           # (cin, TM)

    cconv = w_ref.shape[0]
    out_ref[0, :cconv, :] = conv.astype(out_ref.dtype)
    out_ref[0, cconv:, :] = pooled.astype(out_ref.dtype)


def _pick_tile(m, target):
    """Largest multiple of 128 that divides m and is <= target (else m itself)."""
    if m <= target:
        return m
    t = (target // 128) * 128
    while t >= 128:
        if m % t == 0:
            return t
        t -= 128
    return m


def initial_block(x_nchw, weight_oihw, *, compute_dtype=None, tile_pixels=8192):
    N, Cin, H, W = x_nchw.shape
    Cconv, Cin_w, KH, KW = weight_oihw.shape
    assert Cin == Cin_w and KH == 3 and KW == 3
    stride, pad = 2, 1
    OH = (H + 2 * pad - KH) // stride + 1
    OW = (W + 2 * pad - KW) // stride + 1
    # For even H, W the conv and pool spatial sizes match, so F.pad is identity.
    assert (OH, OW) == (H // 2, W // 2), "odd spatial dims not supported"
    # TODO(synk): odd H/W (nonzero diff_h/diff_w crop in the torch module) not implemented.

    M = OH * OW
    Ctot = Cconv + Cin
    out_dtype = x_nchw.dtype
    cdt = compute_dtype if compute_dtype is not None else x_nchw.dtype

    # Channels-first, tap-major im2col (built once by XLA; no separate pool copy):
    #   patches[n, (kh*3 + kw)*Cin + c, oh*OW + ow] = xp[n, c, 2*oh + kh, 2*ow + kw]
    xp = jnp.pad(x_nchw, ((0, 0), (0, 0), (pad, pad), (pad, pad)))
    taps = [xp[:, :, kh:kh + stride * OH:stride, kw:kw + stride * OW:stride]
            for kh in range(KH) for kw in range(KW)]
    patches = jnp.stack(taps, axis=1).reshape(N, KH * KW * Cin, M).astype(cdt)

    # Torch (Cout, Cin, 3, 3) -> (Cout, kh, kw, Cin) -> (Cout, 9*Cin); matches tap order.
    wmat = jnp.transpose(weight_oihw, (0, 2, 3, 1)).reshape(Cconv, KH * KW * Cin)
    wmat = wmat.astype(cdt)

    TM = _pick_tile(M, tile_pixels)
    grid = (N, M // TM)

    out_flat = pl.pallas_call(
        functools.partial(_initial_block_kernel, cin=Cin),
        out_shape=jax.ShapeDtypeStruct((N, Ctot, M), out_dtype),
        grid=grid,
        in_specs=[
            pl.BlockSpec((1, KH * KW * Cin, TM), lambda n, m: (n, 0, m)),
            pl.BlockSpec((Cconv, KH * KW * Cin), lambda n, m: (0, 0)),
        ],
        out_specs=pl.BlockSpec((1, Ctot, TM), lambda n, m: (n, 0, m)),
        compiler_params=pltpu.CompilerParams(
            dimension_semantics=("parallel", "parallel")),
    )(patches, wmat)

    # Already channels-first with flat spatial -> NCHW via a free reshape.
    return out_flat.reshape(N, Ctot, OH, OW)


if __name__ == "__main__":
    key = jax.random.PRNGKey(0)
    k_x, k_w = jax.random.split(key)

    N, in_ch, H, W = 2, 3, 16, 16
    out_ch = 16  # conv -> out_ch - 3 = 13 channels, concat with 3 pooled input channels

    x = jax.random.normal(k_x, (N, in_ch, H, W), dtype=jnp.float32)
    weight = (jax.random.normal(k_w, (out_ch - 3, in_ch, 3, 3), dtype=jnp.float32)
              * (1.0 / (in_ch * 9) ** 0.5))

    # Pure-JAX reference.
    conv_ref = jax.lax.conv_general_dilated(
        x, weight, window_strides=(2, 2), padding=((1, 1), (1, 1)),
        dimension_numbers=("NCHW", "OIHW", "NCHW"))
    pool_ref = jax.lax.reduce_window(
        x, -jnp.inf, jax.lax.max, (1, 1, 2, 2), (1, 1, 2, 2), "VALID")
    ref = jnp.concatenate([conv_ref, pool_ref], axis=1)

    # f32 data path (v5e default).
    out_f32 = jax.block_until_ready(jax.jit(initial_block)(x, weight))
    assert out_f32.shape == (N, out_ch, H // 2, W // 2), out_f32.shape
    assert jnp.allclose(out_f32, ref, atol=1e-4, rtol=1e-4), \
        float(jnp.max(jnp.abs(out_f32 - ref)))

    # bf16 data path (v6e/v7x guidance): half the HBM bytes, f32 MXU accumulation.
    ib_bf16 = jax.jit(functools.partial(initial_block, compute_dtype=jnp.bfloat16))
    out_bf16 = jax.block_until_ready(ib_bf16(x, weight))
    assert out_bf16.shape == (N, out_ch, H // 2, W // 2), out_bf16.shape
    assert jnp.allclose(out_bf16, ref, atol=1e-1, rtol=1e-1), \
        float(jnp.max(jnp.abs(out_bf16 - ref)))

    print("KERNEL_OK")
</pallas_src>

<mosaic_0001>
module attributes {stable_mosaic.version = 11 : i64} {
  func.func @_initial_block_kernel(%arg0: i32, %arg1: i32, %arg2: memref<1x27x64xf32, #tpu.memory_space<vmem>>, %arg3: memref<13x27xf32, #tpu.memory_space<vmem>>, %arg4: memref<1x16x64xf32, #tpu.memory_space<vmem>>) attributes {dimension_semantics = [#tpu.dimension_semantics<parallel>, #tpu.dimension_semantics<parallel>], iteration_bounds = array<i64: 2, 1>, scalar_prefetch = 0 : i64, scratch_operands = 0 : i64, tpu.core_type = #tpu.core_type<tc>, window_params = [{transform_indices = @transform_0, window_bounds = array<i64: 1, 27, 64>}, {pipeline_mode = #tpu.pipeline_mode<synchronous>, transform_indices = @transform_1, window_bounds = array<i64: 13, 27>}, {transform_indices = @transform_2, window_bounds = array<i64: 1, 16, 64>}]} {
    %c0 = arith.constant 0 : index
    %c0_0 = arith.constant 0 : index
    %c0_1 = arith.constant 0 : index
    %0 = vector.load %arg2[%c0, %c0_0, %c0_1] : memref<1x27x64xf32, #tpu.memory_space<vmem>>, vector<1x27x64xf32>
    %1 = vector.shape_cast %0 : vector<1x27x64xf32> to vector<27x64xf32>
    %c0_2 = arith.constant 0 : index
    %c0_3 = arith.constant 0 : index
    %2 = vector.load %arg3[%c0_2, %c0_3] : memref<13x27xf32, #tpu.memory_space<vmem>>, vector<13x27xf32>
    %cst = arith.constant dense<0.000000e+00> : vector<13x64xf32>
    %3 = tpu.matmul %2, %1, %cst {dimension_numbers = #tpu.dot_dimension_numbers<[1], [0], [0], [1], [0, 0, 1, 1], [], []>} : vector<13x27xf32>, vector<27x64xf32>, vector<13x64xf32> -> vector<13x64xf32>
    %4 = vector.extract_strided_slice %1 {offsets = [12, 0], sizes = [3, 64], strides = [1, 1]} : vector<27x64xf32> to vector<3x64xf32>
    %5 = vector.extract_strided_slice %1 {offsets = [15, 0], sizes = [3, 64], strides = [1, 1]} : vector<27x64xf32> to vector<3x64xf32>
    %6 = arith.maximumf %4, %5 : vector<3x64xf32>
    %7 = vector.extract_strided_slice %1 {offsets = [21, 0], sizes = [3, 64], strides = [1, 1]} : vector<27x64xf32> to vector<3x64xf32>
    %8 = vector.extract_strided_slice %1 {offsets = [24, 0], sizes = [3, 64], strides = [1, 1]} : vector<27x64xf32> to vector<3x64xf32>
    %9 = arith.maximumf %7, %8 : vector<3x64xf32>
    %10 = arith.maximumf %6, %9 : vector<3x64xf32>
    %c0_4 = arith.constant 0 : index
    %c0_5 = arith.constant 0 : index
    %c0_6 = arith.constant 0 : index
    %11 = vector.load %arg4[%c0_4, %c0_5, %c0_6] : memref<1x16x64xf32, #tpu.memory_space<vmem>>, vector<1x13x64xf32>
    %12 = vector.shape_cast %11 : vector<1x13x64xf32> to vector<13x64xf32>
    %13 = vector.shape_cast %3 : vector<13x64xf32> to vector<1x13x64xf32>
    tpu.vector_store %arg4[%c0_4, %c0_5, %c0_6], %13 {strides = array<i32>} : memref<1x16x64xf32, #tpu.memory_space<vmem>>, vector<1x13x64xf32>,
    %c0_7 = arith.constant 0 : index
    %c13 = arith.constant 13 : index
    %c0_8 = arith.constant 0 : index
    %14 = vector.load %arg4[%c0_7, %c13, %c0_8] : memref<1x16x64xf32, #tpu.memory_space<vmem>>, vector<1x3x64xf32>
    %15 = vector.shape_cast %14 : vector<1x3x64xf32> to vector<3x64xf32>
    %16 = vector.shape_cast %10 : vector<3x64xf32> to vector<1x3x64xf32>
    tpu.vector_store %arg4[%c0_7, %c13, %c0_8], %16 {strides = array<i32>} : memref<1x16x64xf32, #tpu.memory_space<vmem>>, vector<1x3x64xf32>,
    return
  }
  func.func @transform_0(%arg0: i32, %arg1: i32) -> (i32, i32, i32) {
    %c0_i32 = arith.constant 0 : i32
    %c0_i32_0 = arith.constant 0 : i32
    return %arg0, %c0_i32, %arg1 : i32, i32, i32
  }
  func.func @transform_1(%arg0: i32, %arg1: i32) -> (i32, i32) {
    %c0_i32 = arith.constant 0 : i32
    %c0_i32_0 = arith.constant 0 : i32
    %c0_i32_1 = arith.constant 0 : i32
    return %c0_i32, %c0_i32_0 : i32, i32
  }
  func.func @transform_2(%arg0: i32, %arg1: i32) -> (i32, i32, i32) {
    %c0_i32 = arith.constant 0 : i32
    %c0_i32_0 = arith.constant 0 : i32
    return %arg0, %c0_i32, %arg1 : i32, i32, i32
  }
}

</mosaic_0001>

<llo_original>
// kernel: initial_block.1
$region0: #{initial_block.1}
  #allocation0 [shape = 'u32[]', space=smem, size = 0x4, offset = 0x4, fixed_abs, tag = 'smem constant byte address 0x4 - core index']
  #allocation1 [shape = 'u32[144,128]{1,0:T(1,128)}', space=vmem, size = 0x12000, scoped, tag = 'internal scratch']
  %s0 = inlined_call_operand.vmem [shape: f32[2,27,64], index: 0, kind: input, shape index: {}]
  %s1 = inlined_call_operand.vmem [shape: f32[13,27], index: 1, kind: input, shape index: {}]
  %s2 = inlined_call_operand.vmem [shape: f32[2,16,64], index: 2, kind: output, shape index: {}]
  %s3 = sld [smem:[#allocation0]]
  $region41: #{initial_block.1} parent=0
    _
  %s5 = ssub.s32 1, %s3
  %s6 = scalar_select 0, %s5, %s3
  loop: start=0, step=1, limit=4
  $region2: #{initial_block.1} parent=0 // loop_pre_header
    _
  $region3: #{initial_block.1} parent=0 // loop_header
    %s8 = sphi 0, %s12
    %p9 = scmp.ge.s32.totalorder %s8, 4
    %s15 = sphi 0, %s27
    %s16 = sphi 0, %s23
    %s17 = sphi 0, %s15
    %s18 = sphi 0, %s16
    %s19 = sphi 0, %s17
    %s20 = sphi 0, %s18
    %s32 = sphi 0, %s34
    %s35 = sphi 0, %s32
    %s36 = sphi 0, %s35
    %s52 = sphi 0, %s36
    %s56 = sphi 0, %s56
    %s58 = sphi 0, %s56
    %s59 = sphi 0, %s58
    %s73 = sphi 0, %s59
    %s81 = sphi 0, %s83
    %s84 = sphi 0, %s81
    %s85 = sphi 0, %s84
    %s101 = sphi 0, %s85
  $region4: #{initial_block.1} parent=0 // loop_header_branch
    %11 = sbr.rel (%p9) target = $region8
  $region5: #{initial_block.1} parent=0 // loop_body
    %s13 = ssub.s32 %s8, 1
    %s14 = ssub.s32 %s8, 2
    %s21 = sadd.s32 1, %s16
    %p22 = scmp.ge.s32.totalorder %s21, 1
    %s23 = scalar_select %p22, 0, %s21
    %s24 = sadd.s32 1, %s15
    %s25 = scalar_select %p22, %s24, %s15
    %p26 = scmp.ge.s32.totalorder %s25, 2
    %s27 = scalar_select %p26, 0, %s25
    %s28 = ssub.s32 %s15, %s27
    %s29 = ssub.s32 %s16, %s23
    %s30 = sor.u32 %s28, %s29
    %p31 = scmp.eq.s32.totalorder %s30, 0
    %s33 = sadd.s32 %s32, 1
    %s34 = scalar_select %p31, %s32, %s33
    %p37 = pneg %p31
    %p38 = scmp.eq.s32.totalorder %s8, 1
    %p39 = por %p37, %p38
    %p40 = scmp.ne.s32.totalorder %s32, %s35
    %p41 = scmp.eq.s32.totalorder %s8, 0
    %p42 = por %p40, %p41
    %p43 = scmp.ne.s32.totalorder %s32, %s35
    %p44 = scmp.eq.s32.totalorder %s13, 1
    %p45 = por %p43, %p44
    %p46 = scmp.ne.s32.totalorder %s35, %s36
    %p47 = scmp.eq.s32.totalorder %s13, 0
    %p48 = por %p46, %p47
    %p49 = scmp.ne.s32.totalorder %s35, %s36
    %p50 = scmp.eq.s32.totalorder %s14, 1
    %p51 = por %p49, %p50
    %p53 = scmp.ne.s32.totalorder %s36, %s52
    %p54 = scmp.eq.s32.totalorder %s14, 0
    %p55 = por %p53, %p54
    %s57 = sadd.s32 %s56, 1
    %p60 = scmp.eq.s32.totalorder %s8, 1
    %p61 = scmp.ne.s32.totalorder %s56, %s58
    %p62 = scmp.eq.s32.totalorder %s8, 0
    %p63 = por %p61, %p62
    %p64 = scmp.ne.s32.totalorder %s56, %s58
    %p65 = scmp.eq.s32.totalorder %s13, 1
    %p66 = por %p64, %p65
    %p67 = scmp.ne.s32.totalorder %s58, %s59
    %p68 = scmp.eq.s32.totalorder %s13, 0
    %p69 = por %p67, %p68
    %p70 = scmp.ne.s32.totalorder %s58, %s59
    %p71 = scmp.eq.s32.totalorder %s14, 1
    %p72 = por %p70, %p71
    %p74 = scmp.ne.s32.totalorder %s59, %s73
    %p75 = scmp.eq.s32.totalorder %s14, 0
    %p76 = por %p74, %p75
    %s77 = ssub.s32 %s15, %s27
    %s78 = ssub.s32 %s16, %s23
    %s79 = sor.u32 %s77, %s78
    %p80 = scmp.eq.s32.totalorder %s79, 0
    %s82 = sadd.s32 %s81, 1
    %s83 = scalar_select %p80, %s81, %s82
    %p86 = pneg %p80
    %p87 = scmp.eq.s32.totalorder %s8, 1
    %p88 = por %p86, %p87
    %p89 = scmp.ne.s32.totalorder %s81, %s84
    %p90 = scmp.eq.s32.totalorder %s8, 0
    %p91 = por %p89, %p90
    %p92 = scmp.ne.s32.totalorder %s81, %s84
    %p93 = scmp.eq.s32.totalorder %s13, 1
    %p94 = por %p92, %p93
    %p95 = scmp.ne.s32.totalorder %s84, %s85
    %p96 = scmp.eq.s32.totalorder %s13, 0
    %p97 = por %p95, %p96
    %p98 = scmp.ne.s32.totalorder %s84, %s85
    %p99 = scmp.eq.s32.totalorder %s14, 1
    %p100 = por %p98, %p99
    %p102 = scmp.ne.s32.totalorder %s85, %s101
    %p103 = scmp.eq.s32.totalorder %s14, 0
    %p104 = por %p102, %p103
    %p105 = scmp.le.s32.totalorder 1, %s8
    %p106 = scmp.lt.s32.totalorder %s8, 3
    %p107 = pnand %p105, %p106
    %p108 = pneg %p107
    // Predicated region
    $region9: #{initial_block.1} parent=5 // pred_check
      _
    $region10: #{initial_block.1} parent=5 // pred_check_branch
      %110 = sbr.rel (%p107) target = $region12
    $region11: #{initial_block.1} parent=5 // pred_region
      %s111 = ssub.s32 %s8, 1
      // Predicated region
      $region13: #{initial_block.1} parent=11 // pred_check
        %p112 = pneg %p69
      $region14: #{initial_block.1} parent=11 // pred_check_branch
        %114 = sbr.rel (%p112) target = $region16
      $region15: #{initial_block.1} parent=11 // pred_region
        _
      $region16: #{initial_block.1} parent=11 // pred_fallthru
        _
    $region12: #{initial_block.1} parent=5 // pred_fallthru
      _
    %p115 = scmp.lt.s32.totalorder %s8, 2
    // Predicated region
    $region17: #{initial_block.1} parent=5 // pred_check
      %p116 = pneg %p115
    $region18: #{initial_block.1} parent=5 // pred_check_branch
      %118 = sbr.rel (%p116) target = $region20
    $region19: #{initial_block.1} parent=5 // pred_region
      // Predicated region
      $region21: #{initial_block.1} parent=19 // pred_check
        %p119 = pneg %p42
      $region22: #{initial_block.1} parent=19 // pred_check_branch
        %121 = sbr.rel (%p119) target = $region24
      $region23: #{initial_block.1} parent=19 // pred_region
        %p122 = scmp.lt.s32.totalorder %s15, 1
        %s123 = scalar_select %p122, %s15, 1
        %p124 = scmp.lt.s32.totalorder %s16, 0
        %s125 = scalar_select %p124, %s16, 0
        %s126 = smul.addr %s123, 4
        %s127 = sadd.s32 %s125, %s126
        %s128 = smul.addr %s127, 8
        %s129 = scalar_lea.vmem %s0, %s128
      $region24: #{initial_block.1} parent=19 // pred_fallthru
        _
    $region20: #{initial_block.1} parent=5 // pred_fallthru
      _
    %p130 = scmp.le.s32.totalorder 1, %s8
    %p131 = scmp.lt.s32.totalorder %s8, 3
    %p132 = pnand %p130, %p131
    %p133 = pneg %p132
    // Predicated region
    $region25: #{initial_block.1} parent=5 // pred_check
      _
    $region26: #{initial_block.1} parent=5 // pred_check_branch
      %135 = sbr.rel (%p132) target = $region28
    $region27: #{initial_block.1} parent=5 // pred_region
      %s136 = ssub.s32 %s8, 1
      %p137 = scmp.lt.s32.totalorder %s17, 1
      %s138 = scalar_select %p137, %s17, 1
      %p139 = scmp.lt.s32.totalorder %s18, 0
      %s140 = scalar_select %p139, %s18, 0
      %s141 = smul.addr %s138, 4
      %s142 = sadd.s32 %s140, %s141
      %s143 = smul.addr %s142, 8
      %s144 = scalar_lea.vmem %s0, %s143
      %p145 = pneg %p48
      %p146 = pneg %p45
      %p147 = pneg %p69
      %p148 = pneg %p66
      %p149 = pneg %p97
      %p150 = pneg %p94
      %p151 = scmp.lt.s32.totalorder %s17, 1
      %s152 = scalar_select %p151, %s17, 1
      %p153 = scmp.lt.s32.totalorder %s18, 0
      %s154 = scalar_select %p153, %s18, 0
      %s155 = smul.addr %s152, 2
      %s156 = sadd.s32 %s154, %s155
      %s157 = smul.addr %s156, 8
      %s158 = scalar_lea.vmem %s2, %s157
      %p159 = scmp.lt.s32.totalorder %s17, 1
      %s160 = scalar_select %p159, %s17, 1
      %p161 = scmp.lt.s32.totalorder %s18, 0
      %s162 = scalar_select %p161, %s18, 0
      %s163 = smul.addr %s160, 4
      %s164 = sadd.s32 %s162, %s163
      %s165 = smul.addr %s164, 8
      %s166 = scalar_lea.vmem %s0, %s165
      %p167 = scmp.lt.s32.totalorder %s17, 1
      %s168 = scalar_select %p167, %s17, 1
      %p169 = scmp.lt.s32.totalorder %s18, 0
      %s170 = scalar_select %p169, %s18, 0
      %s171 = smul.addr %s168, 2
      %s172 = sadd.s32 %s170, %s171
      %s173 = smul.addr %s172, 8
      %s174 = scalar_lea.vmem %s2, %s173
      %v175 = vld [vmem:[%s166] sm:$0xff]
      %v176 = vld [vmem:[%s166 + $0x8] sm:$0xff]
      %v177 = vld [vmem:[%s166 + $0x10] sm:$0xff]
      %v178 = vld [vmem:[%s166 + $0x18] sm:$0x7]
      %v179 = vld [vmem:[%s1] sm:$0xff]
      %v180 = vld [vmem:[%s1 + $0x8] sm:$0x1f]
      %vm181 = vcmask 220160
      %v183 = vsel %vm181, %v179, 0
      %v186 = vsel %vm181, %v180, 0
      %vm188 = vcmask 1042432
      %v190 = vsel %vm188, %v178, 0
      %192 = vmatprep.subr.mxu0 0.0
      %193 = vmatpush1.msra.mxu0 %v175
      %194 = vmatprep.subr.mxu0 0.0
      %195 = vmatpush1.msra.mxu0 %v176
      %196 = vmatprep.subr.mxu0 0.0
      %197 = vmatpush1.msra.mxu0 %v177
      %198 = vmatprep.subr.mxu0 0.0
      %199 = vmatpush1.msra.mxu0 %v190
      %200 = vmatprep.subr.mxu0 0.0
      %201 = vmatpush1.msra.mxu0 0.0
      %202 = vmatprep.subr.mxu0 0.0
      %203 = vmatpush1.msra.mxu0 0.0
      %204 = vmatprep.subr.mxu0 0.0
      %205 = vmatpush1.msra.mxu0 0.0
      %206 = vmatprep.subr.mxu0 0.0
      %207 = vmatpush1.msra.mxu0 0.0
      %208 = vmatprep.subr.mxu0 0.0
      %209 = vmatpush1.msra.mxu0 0.0
      %210 = vmatprep.subr.mxu0 0.0
      %211 = vmatpush1.msra.mxu0 0.0
      %212 = vmatprep.subr.mxu0 0.0
      %213 = vmatpush1.msra.mxu0 0.0
      %214 = vmatprep.subr.mxu0 0.0
      %215 = vmatpush1.msra.mxu0 0.0
      %216 = vmatprep.subr.mxu0 0.0
      %217 = vmatpush1.msra.mxu0 0.0
      %218 = vmatprep.subr.mxu0 0.0
      %219 = vmatpush1.msra.mxu0 0.0
      %220 = vmatprep.subr.mxu0 0.0
      %221 = vmatpush1.msra.mxu0 0.0
      %222 = vmatprep.subr.mxu0 0.0
      %223 = vmatpush1.msra.mxu0 0.0
      %224 = vmatprep.subr.mxu0 0.0
      %225 = vmatpush1.msra.mxu0 0.0
      %226 = vmatprep.subr.mxu0 0.0
      %227 = vmatpush1.msra.mxu0 0.0
      %228 = vmatprep.subr.mxu0 0.0
      %229 = vmatpush1.msra.mxu0 0.0
      %230 = vmatprep.subr.mxu0 0.0
      %231 = vmatpush1.msra.mxu0 0.0
      %232 = vmatprep.subr.mxu0 0.0
      %233 = vmatpush1.msra.mxu0 0.0
      %234 = vmatprep.subr.mxu0 0.0
      %235 = vmatpush1.msra.mxu0 0.0
      %236 = vmatprep.subr.mxu0 0.0
      %237 = vmatpush1.msra.mxu0 0.0
      %238 = vmatprep.subr.mxu0 0.0
      %239 = vmatpush1.msra.mxu0 0.0
      %240 = vmatprep.subr.mxu0 0.0
      %241 = vmatpush1.msra.mxu0 0.0
      %242 = vmatprep.subr.mxu0 0.0
      %243 = vmatpush1.msra.mxu0 0.0
      %244 = vmatprep.subr.mxu0 0.0
      %245 = vmatpush1.msra.mxu0 0.0
      %246 = vmatprep.subr.mxu0 0.0
      %247 = vmatpush1.msra.mxu0 0.0
      %248 = vmatprep.subr.mxu0 0.0
      %249 = vmatpush1.msra.mxu0 0.0
      %250 = vmatprep.subr.mxu0 0.0
      %251 = vmatpush1.msra.mxu0 0.0
      %252 = vmatprep.subr.mxu0 0.0
      %253 = vmatpush1.msra.mxu0 0.0
      %254 = vmatprep.subr.mxu0 0.0
      %255 = vmatpush1.msra.mxu0 0.0
      %256 = vmatprep.mubr.f32.mxu0 0.0
      %257 = vmatmul.mubr.f32.gmra.mrb[0].mxu0 %v183
      %v258 = vpop.f32.mrb[0].mxu0
      %v259 = vadd.f32 0.0, %v258
      %v260 = vpop.f32.mrb[0].mxu0
      %261 = vmatprep.mubr.f32.mxu0 0.0
      %262 = vmatmul.mubr.f32.gmra.mrb[0].mxu0 %v186
      %v263 = vpop.f32.mrb[0].mxu0
      %v264 = vadd.f32 0.0, %v263
      %v265 = vpop.f32.mrb[0].mxu0
      %266 = vdwg.mxu0
      %vm269 = vcmask 1044480
      %v270 = vrot.slane %v176, 3
      %v271 = vrot.slane %v177, 3
      %v272 = vsel %vm269, %v270, %v271
      %v274 = vmax.f32 %v176, %v272
      %v275 = vrot.slane %v178, 3
      %v277 = vmax.f32 %v177, %v275
      %v279 = vrot.slane %v277, 1
      %v281 = vmax.f32 %v274, %v279
      %vm282 = vcmask 523264
      %283 = vst.msk [vmem:[%s174] sm:$0xff] %vm282, %v259
      %vm284 = vcmask 520192
      %285 = vst.msk [vmem:[%s174 + $0x8] sm:$0x1f] %vm284, %v264
      %vm286 = vcmask 522244
      %287 = vst.msk [vmem:[%s174 + $0x9] sm:$0x70] %vm286, %v281
      %p288 = scmp.lt.s32.totalorder %s17, 1
      %s289 = scalar_select %p288, %s17, 1
      %p290 = scmp.lt.s32.totalorder %s18, 0
      %s291 = scalar_select %p290, %s18, 0
      %s292 = smul.addr %s289, 2
      %s293 = sadd.s32 %s291, %s292
      %s294 = smul.addr %s293, 8
      %s295 = scalar_lea.vmem %s2, %s294
      // Predicated region
      $region29: #{initial_block.1} parent=27 // pred_check
        %p296 = pneg %p94
      $region30: #{initial_block.1} parent=27 // pred_check_branch
        %298 = sbr.rel (%p296) target = $region32
      $region31: #{initial_block.1} parent=27 // pred_region
        _
      $region32: #{initial_block.1} parent=27 // pred_fallthru
        _
    $region28: #{initial_block.1} parent=5 // pred_fallthru
      _
    %p299 = scmp.le.s32.totalorder 2, %s8
    // Predicated region
    $region33: #{initial_block.1} parent=5 // pred_check
      %p300 = pneg %p299
    $region34: #{initial_block.1} parent=5 // pred_check_branch
      %302 = sbr.rel (%p300) target = $region36
    $region35: #{initial_block.1} parent=5 // pred_region
      %s303 = ssub.s32 %s8, 2
      // Predicated region
      $region37: #{initial_block.1} parent=35 // pred_check
        %p304 = pneg %p100
      $region38: #{initial_block.1} parent=35 // pred_check_branch
        %306 = sbr.rel (%p304) target = $region40
      $region39: #{initial_block.1} parent=35 // pred_region
        %p307 = scmp.lt.s32.totalorder %s19, 1
        %s308 = scalar_select %p307, %s19, 1
        %p309 = scmp.lt.s32.totalorder %s20, 0
        %s310 = scalar_select %p309, %s20, 0
        %s311 = smul.addr %s308, 2
        %s312 = sadd.s32 %s310, %s311
        %s313 = smul.addr %s312, 8
        %s314 = scalar_lea.vmem %s2, %s313
      $region40: #{initial_block.1} parent=35 // pred_fallthru
        _
    $region36: #{initial_block.1} parent=5 // pred_fallthru
      _
  $region6: #{initial_block.1} parent=0 // loop_footer
    %s12 = sadd.s32 1, %s8
  $region7: #{initial_block.1} parent=0 // loop_footer_branch
    %7 = sbr.rel target = $region3
  $region8: #{initial_block.1} parent=0 // loop_exit
    _

</llo_original>
